<compile_context>
chip_gen: v5e
topology: v5e:2x2
jax: 0.10.0
libtpu: 0.0.40
codegen_flags: <defaults>
</compile_context>

<pallas_src>
import jax
import jax.numpy as jnp
import numpy as np
from jax.experimental import pallas as pl
from jax.experimental.pallas import tpu as pltpu


def _round_up(x, m):
    return ((x + m - 1) // m) * m


def sine_layer_kernel(x_ref, w_ref, b_ref, o_ref):
    # x_ref: (TM, K), w_ref: (K, TN)  [pre-transposed, omega_0 folded],
    # b_ref: (1, TN) f32 (omega_0 folded), o_ref: (TM, TN).
    acc = jnp.dot(x_ref[...], w_ref[...], preferred_element_type=jnp.float32)
    o_ref[...] = jnp.sin(acc + b_ref[...]).astype(o_ref.dtype)


def prepare_sine_layer_params(weight, bias, omega0=30.0, dtype=jnp.float32):
    """One-time parameter prep: fold omega_0, transpose W to (K, N), pad N to 128 lanes.

    weight: (out_features, in_features) (PyTorch layout); bias: (out_features,).
    Returns (w_prep (in_f, n_pad) in `dtype`, b_prep (1, n_pad) f32, out_f, in_f).
    K (= in_features) is deliberately NOT padded: x streams un-padded from HBM and
    a full-K block is a legal TPU block shape.
    """
    out_f, in_f = weight.shape
    n_pad = _round_up(out_f, 128)
    w = (omega0 * weight.astype(jnp.float32)).T.astype(dtype)     # (K, N) canonical MXU layout
    w = jnp.pad(w, ((0, 0), (0, n_pad - out_f)))                  # zero cols -> sin(0)=0, sliced off
    b = (omega0 * bias.astype(jnp.float32))
    b = jnp.pad(b, (0, n_pad - out_f)).reshape(1, n_pad)
    return w, b, out_f, in_f


def _vmem_budget_bytes():
    cap = 64 << 20  # conservative fallback: v7x per-TensorCore VMEM
    try:
        cap = int(pltpu.get_tpu_info().vmem_capacity_bytes)
    except Exception:
        pass
    # ~48 MiB on v7x (64 MiB physical), ~96 MiB on v5e/v6e (128 MiB physical)
    return (cap * 3) // 4


def sine_layer_apply(x, w_prep, b_prep, out_f, in_f, *, tm=2048, out_dtype=None):
    """x: (..., in_features) -> (..., out_features).

    Grid = (row tiles, N tiles). Rows use partial edge tiles (no M padding / wrapper
    pad pass); K is un-padded; the N axis only tiles when the weight would not fit
    comfortably in the per-generation VMEM budget.
    """
    lead = x.shape[:-1]
    out_dtype = x.dtype if out_dtype is None else out_dtype
    xm = x.reshape(-1, in_f)
    if xm.dtype != w_prep.dtype:
        xm = xm.astype(w_prep.dtype)          # bf16 operand path when params prepped in bf16
    M = xm.shape[0]
    K, n_pad = w_prep.shape

    in_itemsize = np.dtype(w_prep.dtype).itemsize
    out_itemsize = np.dtype(out_dtype).itemsize
    budget = _vmem_budget_bytes()

    # --- N tile: full n_pad unless the (double-buffered) weight would eat > 1/2 budget.
    def w_bytes(tn):
        return 2 * (K * tn * in_itemsize + tn * 4)

    TN = n_pad
    if w_bytes(TN) > budget // 2:
        tn_max = (budget // 2) // (2 * (K * in_itemsize + 4))
        TN = min(n_pad, max(128, (tn_max // 128) * 128))
    grid_n = pl.cdiv(n_pad, TN)

    # --- Row tile: as large as the VMEM budget allows (amortizes per-grid-step overhead,
    # esp. at v7x's 3.2 TB/s), but split into >=2 tiles so both v7x TensorCores get work.
    def fits(tm_):
        need = (2 * tm_ * K * in_itemsize        # x tile, double-buffered
                + 2 * tm_ * TN * out_itemsize    # out tile, double-buffered
                + w_bytes(TN)                    # weight + bias
                + (2 << 20))                     # headroom
        return need <= budget

    tm_cap = max(8, (int(tm) // 8) * 8)
    while tm_cap > 8 and not fits(tm_cap):
        tm_cap = max(8, ((tm_cap // 2) // 8) * 8)

    if M >= 16:
        TM = min(tm_cap, _round_up(pl.cdiv(M, 2), 8))   # >=2 row tiles, multiple of 8
    else:
        TM = max(1, min(tm_cap, M))                     # single full-extent block
    grid_m = pl.cdiv(M, TM)

    out = pl.pallas_call(
        sine_layer_kernel,
        out_shape=jax.ShapeDtypeStruct((M, n_pad), out_dtype),
        grid=(grid_m, grid_n),
        in_specs=[
            pl.BlockSpec((TM, K), lambda i, j: (i, 0)),   # x: rows tiled, K full (un-padded)
            pl.BlockSpec((K, TN), lambda i, j: (0, j)),   # W: (K, N); resident when grid_n == 1
            pl.BlockSpec((1, TN), lambda i, j: (0, j)),   # bias (f32)
        ],
        out_specs=pl.BlockSpec((TM, TN), lambda i, j: (i, j)),
        compiler_params=pltpu.CompilerParams(
            dimension_semantics=("parallel", "parallel"),  # independent tiles (megacore split)
            vmem_limit_bytes=int(budget),
        ),
    )(xm, w_prep, b_prep)

    if n_pad != out_f:
        out = out[:, :out_f]
    return out.reshape(*lead, out_f)


def sine_layer(x, weight, bias, omega0=30.0, *, tm=2048, dtype=None):
    """Convenience wrapper taking raw PyTorch-layout params (weight (N,K), bias (N,))."""
    dtype = x.dtype if dtype is None else dtype
    w_prep, b_prep, out_f, in_f = prepare_sine_layer_params(
        weight, bias, omega0=omega0, dtype=dtype)
    return sine_layer_apply(x, w_prep, b_prep, out_f, in_f, tm=tm)


def init_sine_layer_params(key, in_features, out_features, is_first=False, omega0=30.0):
    """Deterministic re-implementation of SineLayer.init_weights (uniform ranges)."""
    wkey, bkey = jax.random.split(key)
    if is_first:
        bound_w = 1.0 / in_features
    else:
        bound_w = np.sqrt(6.0 / in_features) / omega0
    weight = jax.random.uniform(
        wkey, (out_features, in_features), jnp.float32, -bound_w, bound_w)
    # nn.Linear default bias init: U(-1/sqrt(in), 1/sqrt(in))
    bound_b = 1.0 / np.sqrt(in_features)
    bias = jax.random.uniform(bkey, (out_features,), jnp.float32, -bound_b, bound_b)
    return weight, bias


if __name__ == "__main__":
    key = jax.random.PRNGKey(0)
    k_x, k_p = jax.random.split(key)

    batch, seq, in_features, out_features = 2, 8, 32, 32
    omega0 = 30.0
    is_first = True

    x = jax.random.normal(k_x, (batch, seq, in_features), jnp.float32)
    weight, bias = init_sine_layer_params(
        k_p, in_features, out_features, is_first=is_first, omega0=omega0)

    # Reference in plain JAX (matches PyTorch SineLayer.forward semantics).
    y_ref = jnp.sin(omega0 * (x @ weight.T + bias[None, None, :]))

    # f32 operand path.
    w_prep, b_prep, out_f, in_f = prepare_sine_layer_params(weight, bias, omega0=omega0)
    y = jax.block_until_ready(sine_layer_apply(x, w_prep, b_prep, out_f, in_f))
    np.testing.assert_allclose(np.asarray(y), np.asarray(y_ref), atol=5e-5, rtol=5e-5)

    # bf16 operand path (halves dominant HBM traffic); f32 accumulation + f32 sin epilogue.
    w_bf, b_bf, _, _ = prepare_sine_layer_params(
        weight, bias, omega0=omega0, dtype=jnp.bfloat16)
    y_bf = jax.block_until_ready(sine_layer_apply(x, w_bf, b_bf, out_f, in_f))
    np.testing.assert_allclose(np.asarray(y_bf), np.asarray(y_ref), atol=1.5e-1, rtol=0)

    print("KERNEL_OK")
</pallas_src>

<mosaic_0001>
module attributes {stable_mosaic.version = 11 : i64} {
  func.func @sine_layer_kernel(%arg0: i32, %arg1: i32, %arg2: memref<8x32xf32, #tpu.memory_space<vmem>>, %arg3: memref<32x128xf32, #tpu.memory_space<vmem>>, %arg4: memref<1x128xf32, #tpu.memory_space<vmem>>, %arg5: memref<8x128xf32, #tpu.memory_space<vmem>>) attributes {dimension_semantics = [#tpu.dimension_semantics<parallel>, #tpu.dimension_semantics<parallel>], iteration_bounds = array<i64: 2, 1>, scalar_prefetch = 0 : i64, scratch_operands = 0 : i64, tpu.core_type = #tpu.core_type<tc>, window_params = [{transform_indices = @transform_0, window_bounds = array<i64: 8, 32>}, {transform_indices = @transform_1, window_bounds = array<i64: 32, 128>}, {transform_indices = @transform_2, window_bounds = array<i64: 1, 128>}, {transform_indices = @transform_3, window_bounds = array<i64: 8, 128>}]} {
    %c0 = arith.constant 0 : index
    %c0_0 = arith.constant 0 : index
    %0 = vector.load %arg2[%c0, %c0_0] : memref<8x32xf32, #tpu.memory_space<vmem>>, vector<8x32xf32>
    %c0_1 = arith.constant 0 : index
    %c0_2 = arith.constant 0 : index
    %1 = vector.load %arg3[%c0_1, %c0_2] : memref<32x128xf32, #tpu.memory_space<vmem>>, vector<32x128xf32>
    %cst = arith.constant dense<0.000000e+00> : vector<8x128xf32>
    %2 = tpu.matmul %0, %1, %cst {dimension_numbers = #tpu.dot_dimension_numbers<[1], [0], [0], [1], [0, 0, 1, 1], [], []>} : vector<8x32xf32>, vector<32x128xf32>, vector<8x128xf32> -> vector<8x128xf32>
    %c0_3 = arith.constant 0 : index
    %c0_4 = arith.constant 0 : index
    %3 = vector.load %arg4[%c0_3, %c0_4] : memref<1x128xf32, #tpu.memory_space<vmem>>, vector<1x128xf32>
    %4 = vector.broadcast %3 : vector<1x128xf32> to vector<8x128xf32>
    %5 = arith.addf %2, %4 : vector<8x128xf32>
    %6 = math.sin %5 : vector<8x128xf32>
    %c0_5 = arith.constant 0 : index
    %c0_6 = arith.constant 0 : index
    %7 = vector.load %arg5[%c0_5, %c0_6] : memref<8x128xf32, #tpu.memory_space<vmem>>, vector<8x128xf32>
    tpu.vector_store %arg5[%c0_5, %c0_6], %6 {strides = array<i32>} : memref<8x128xf32, #tpu.memory_space<vmem>>, vector<8x128xf32>,
    return
  }
  func.func @transform_0(%arg0: i32, %arg1: i32) -> (i32, i32) {
    %c0_i32 = arith.constant 0 : i32
    %c0_i32_0 = arith.constant 0 : i32
    return %arg0, %c0_i32 : i32, i32
  }
  func.func @transform_1(%arg0: i32, %arg1: i32) -> (i32, i32) {
    %c0_i32 = arith.constant 0 : i32
    %c0_i32_0 = arith.constant 0 : i32
    return %c0_i32, %arg1 : i32, i32
  }
  func.func @transform_2(%arg0: i32, %arg1: i32) -> (i32, i32) {
    %c0_i32 = arith.constant 0 : i32
    %c0_i32_0 = arith.constant 0 : i32
    return %c0_i32, %arg1 : i32, i32
  }
  func.func @transform_3(%arg0: i32, %arg1: i32) -> (i32, i32) {
    %c0_i32 = arith.constant 0 : i32
    return %arg0, %arg1 : i32, i32
  }
}

</mosaic_0001>

<llo_original>
// kernel: tpu_custom_call.1
$region0: #{tpu_custom_call.1}
  #allocation0 [shape = 'u32[]', space=smem, size = 0x4, offset = 0x4, fixed_abs, tag = 'smem constant byte address 0x4 - core index']
  #allocation1 [shape = 'u32[72,128]{1,0:T(1,128)}', space=vmem, size = 0x9000, scoped, tag = 'internal scratch']
  %s0 = inlined_call_operand.hbm [shape: f32[16,32], index: 0, kind: input, shape index: {}]
  %s1 = inlined_call_operand.hbm [shape: f32[32,128], index: 1, kind: input, shape index: {}]
  %s2 = inlined_call_operand.vmem [shape: f32[1,128], index: 2, kind: input, shape index: {}]
  %s3 = inlined_call_operand.hbm [shape: f32[16,128], index: 3, kind: output, shape index: {}]
  %s4 = sld [smem:[#allocation0]]
  $region53: #{tpu_custom_call.1} parent=0
    _
  %s6 = ssub.s32 1, %s4
  %s7 = scalar_select 0, %s6, %s4
  $region1: #{tpu_custom_call.1} parent=0
    #allocation2 [shape = 'u8[8192]{0}', space=vmem, size = 0x2000, scoped, tag = 'input window, operand 0']
    #allocation3 [shape = 's32[2]{0}', space=sflag, size = 0x8, scoped, tag = 'scoped memory for tpu_custom_call.1']
    #allocation4 [shape = 's32[2]{0}', space=sflag, size = 0x8, scoped, tag = 'scoped memory for tpu_custom_call.1']
    #allocation5 [shape = 'u8[16384]{0}', space=vmem, size = 0x4000, scoped, tag = 'input window, operand 1, single buffered']
    #allocation6 [shape = 's32[1]{0}', space=sflag, size = 0x4, scoped, tag = 'scoped memory for tpu_custom_call.1']
    #allocation7 [shape = 'u8[8192]{0}', space=vmem, size = 0x2000, scoped, tag = 'output window, operand 0']
    %8 = vsyncpa [#allocation3], 0
    %s9 = scalar_lea.sflag [#allocation3], 1
    %10 = vsyncpa %s9, 0
    %11 = vsyncpa [#allocation6], 0
    %12 = vsyncpa [#allocation4], 0
    %s13 = scalar_lea.sflag [#allocation4], 1
    %14 = vsyncpa %s13, 0
    loop: start=0, step=1, limit=4
    $region2: #{tpu_custom_call.1} parent=1 // loop_pre_header
      _
    $region3: #{tpu_custom_call.1} parent=1 // loop_header
      %s16 = sphi 0, %s20
      %p17 = scmp.ge.s32.totalorder %s16, 4
      %s23 = sphi 0, %s35
      %s24 = sphi 0, %s31
      %s25 = sphi 0, %s23
      %s26 = sphi 0, %s24
      %s27 = sphi 0, %s25
      %s28 = sphi 0, %s26
      %s38 = sphi 0, %s40
      %s41 = sphi 0, %s38
      %s42 = sphi 0, %s41
      %s58 = sphi 0, %s42
      %s64 = sphi 0, %s66
      %s67 = sphi 0, %s64
      %s68 = sphi 0, %s67
      %s84 = sphi 0, %s68
      %s90 = sphi 0, %s92
      %s93 = sphi 0, %s90
      %s94 = sphi 0, %s93
      %s110 = sphi 0, %s94
      %s118 = sphi 0, %s120
      %s121 = sphi 0, %s118
      %s122 = sphi 0, %s121
      %s138 = sphi 0, %s122
    $region4: #{tpu_custom_call.1} parent=1 // loop_header_branch
      %19 = sbr.rel (%p17) target = $region8
    $region5: #{tpu_custom_call.1} parent=1 // loop_body
      %s21 = ssub.s32 %s16, 1
      %s22 = ssub.s32 %s16, 2
      %s29 = sadd.s32 1, %s24
      %p30 = scmp.ge.s32.totalorder %s29, 1
      %s31 = scalar_select %p30, 0, %s29
      %s32 = sadd.s32 1, %s23
      %s33 = scalar_select %p30, %s32, %s23
      %p34 = scmp.ge.s32.totalorder %s33, 2
      %s35 = scalar_select %p34, 0, %s33
      %s36 = ssub.s32 %s23, %s35
      %p37 = scmp.eq.s32.totalorder %s36, 0
      %s39 = sadd.s32 %s38, 1
      %s40 = scalar_select %p37, %s38, %s39
      %p43 = pneg %p37
      %p44 = scmp.eq.s32.totalorder %s16, 1
      %p45 = por %p43, %p44
      %p46 = scmp.ne.s32.totalorder %s38, %s41
      %p47 = scmp.eq.s32.totalorder %s16, 0
      %p48 = por %p46, %p47
      %p49 = scmp.ne.s32.totalorder %s38, %s41
      %p50 = scmp.eq.s32.totalorder %s21, 1
      %p51 = por %p49, %p50
      %p52 = scmp.ne.s32.totalorder %s41, %s42
      %p53 = scmp.eq.s32.totalorder %s21, 0
      %p54 = por %p52, %p53
      %p55 = scmp.ne.s32.totalorder %s41, %s42
      %p56 = scmp.eq.s32.totalorder %s22, 1
      %p57 = por %p55, %p56
      %p59 = scmp.ne.s32.totalorder %s42, %s58
      %p60 = scmp.eq.s32.totalorder %s22, 0
      %p61 = por %p59, %p60
      %s62 = ssub.s32 %s24, %s31
      %p63 = scmp.eq.s32.totalorder %s62, 0
      %s65 = sadd.s32 %s64, 1
      %s66 = scalar_select %p63, %s64, %s65
      %p69 = pneg %p63
      %p70 = scmp.eq.s32.totalorder %s16, 1
      %p71 = por %p69, %p70
      %p72 = scmp.ne.s32.totalorder %s64, %s67
      %p73 = scmp.eq.s32.totalorder %s16, 0
      %p74 = por %p72, %p73
      %p75 = scmp.ne.s32.totalorder %s64, %s67
      %p76 = scmp.eq.s32.totalorder %s21, 1
      %p77 = por %p75, %p76
      %p78 = scmp.ne.s32.totalorder %s67, %s68
      %p79 = scmp.eq.s32.totalorder %s21, 0
      %p80 = por %p78, %p79
      %p81 = scmp.ne.s32.totalorder %s67, %s68
      %p82 = scmp.eq.s32.totalorder %s22, 1
      %p83 = por %p81, %p82
      %p85 = scmp.ne.s32.totalorder %s68, %s84
      %p86 = scmp.eq.s32.totalorder %s22, 0
      %p87 = por %p85, %p86
      %s88 = ssub.s32 %s24, %s31
      %p89 = scmp.eq.s32.totalorder %s88, 0
      %s91 = sadd.s32 %s90, 1
      %s92 = scalar_select %p89, %s90, %s91
      %p95 = pneg %p89
      %p96 = scmp.eq.s32.totalorder %s16, 1
      %p97 = por %p95, %p96
      %p98 = scmp.ne.s32.totalorder %s90, %s93
      %p99 = scmp.eq.s32.totalorder %s16, 0
      %p100 = por %p98, %p99
      %p101 = scmp.ne.s32.totalorder %s90, %s93
      %p102 = scmp.eq.s32.totalorder %s21, 1
      %p103 = por %p101, %p102
      %p104 = scmp.ne.s32.totalorder %s93, %s94
      %p105 = scmp.eq.s32.totalorder %s21, 0
      %p106 = por %p104, %p105
      %p107 = scmp.ne.s32.totalorder %s93, %s94
      %p108 = scmp.eq.s32.totalorder %s22, 1
      %p109 = por %p107, %p108
      %p111 = scmp.ne.s32.totalorder %s94, %s110
      %p112 = scmp.eq.s32.totalorder %s22, 0
      %p113 = por %p111, %p112
      %s114 = ssub.s32 %s23, %s35
      %s115 = ssub.s32 %s24, %s31
      %s116 = sor.u32 %s114, %s115
      %p117 = scmp.eq.s32.totalorder %s116, 0
      %s119 = sadd.s32 %s118, 1
      %s120 = scalar_select %p117, %s118, %s119
      %p123 = pneg %p117
      %p124 = scmp.eq.s32.totalorder %s16, 1
      %p125 = por %p123, %p124
      %p126 = scmp.ne.s32.totalorder %s118, %s121
      %p127 = scmp.eq.s32.totalorder %s16, 0
      %p128 = por %p126, %p127
      %p129 = scmp.ne.s32.totalorder %s118, %s121
      %p130 = scmp.eq.s32.totalorder %s21, 1
      %p131 = por %p129, %p130
      %p132 = scmp.ne.s32.totalorder %s121, %s122
      %p133 = scmp.eq.s32.totalorder %s21, 0
      %p134 = por %p132, %p133
      %p135 = scmp.ne.s32.totalorder %s121, %s122
      %p136 = scmp.eq.s32.totalorder %s22, 1
      %p137 = por %p135, %p136
      %p139 = scmp.ne.s32.totalorder %s122, %s138
      %p140 = scmp.eq.s32.totalorder %s22, 0
      %p141 = por %p139, %p140
      %p142 = scmp.le.s32.totalorder 1, %s16
      %p143 = scmp.lt.s32.totalorder %s16, 3
      %p144 = pnand %p142, %p143
      %p145 = pneg %p144
      // Predicated region
      $region9: #{tpu_custom_call.1} parent=5 // pred_check
        _
      $region10: #{tpu_custom_call.1} parent=5 // pred_check_branch
        %147 = sbr.rel (%p144) target = $region12
      $region11: #{tpu_custom_call.1} parent=5 // pred_region
        %s148 = ssub.s32 %s16, 1
        // Predicated region
        $region13: #{tpu_custom_call.1} parent=11 // pred_check
          %p149 = pneg %p80
        $region14: #{tpu_custom_call.1} parent=11 // pred_check_branch
          %151 = sbr.rel (%p149) target = $region16
        $region15: #{tpu_custom_call.1} parent=11 // pred_region
          %153 = vsyncadd [#allocation6], 0
          %s154 = smul.addr %s26, 8
          %s155 = scalar_lea.hbm %s1, %s154
          %s156 = sshll.u32 %s155, 4
          %s157 = int_to_ptr.hbm [resolvable:$true] %s156
          %s158 = sshll.u32 [#allocation5], 4
          %s159 = int_to_ptr.vmem [resolvable:$true] %s158
          %164 = dma.hbm_to_vmem [thread:$0]  %s157, 512, %s159, [#allocation6], 128, 128, 8
        $region16: #{tpu_custom_call.1} parent=11 // pred_fallthru
          _
        // Predicated region
        $region17: #{tpu_custom_call.1} parent=11 // pred_check
          %p165 = pneg %p106
        $region18: #{tpu_custom_call.1} parent=11 // pred_check_branch
          %167 = sbr.rel (%p165) target = $region20
        $region19: #{tpu_custom_call.1} parent=11 // pred_region
          %p168 = scmp.lt.s32.totalorder %s26, 0
          %s169 = scalar_select %p168, %s26, 0
          %s170 = scalar_lea.vmem %s2, %s169
        $region20: #{tpu_custom_call.1} parent=11 // pred_fallthru
          _
      $region12: #{tpu_custom_call.1} parent=5 // pred_fallthru
        _
      %p171 = scmp.lt.s32.totalorder %s16, 2
      // Predicated region
      $region21: #{tpu_custom_call.1} parent=5 // pred_check
        %p172 = pneg %p171
      $region22: #{tpu_custom_call.1} parent=5 // pred_check_branch
        %174 = sbr.rel (%p172) target = $region24
      $region23: #{tpu_custom_call.1} parent=5 // pred_region
        // Predicated region
        $region25: #{tpu_custom_call.1} parent=23 // pred_check
          %p175 = pneg %p48
        $region26: #{tpu_custom_call.1} parent=23 // pred_check_branch
          %177 = sbr.rel (%p175) target = $region28
        $region27: #{tpu_custom_call.1} parent=23 // pred_region
          %s178 = sand.u32 %s38, 1
          %s179 = scalar_lea.sflag [#allocation3], %s178
          %s180 = sand.u32 %s38, 1
          %s181 = smul.addr %s180, 8
          %s182 = scalar_lea.vmem [#allocation2], %s181
          %184 = vsyncadd %s179, 0
          %s185 = smul.addr %s23, 8
          %s186 = scalar_lea.hbm %s0, %s185
          %s188 = sshll.u32 %s186, 4
          %s189 = int_to_ptr.hbm [resolvable:$true] %s188
          %s190 = sshll.u32 %s182, 4
          %s191 = int_to_ptr.vmem [resolvable:$true] %s190
          %193 = dma.hbm_to_vmem [thread:$0]  %s189, 128, %s191, %s179
        $region28: #{tpu_custom_call.1} parent=23 // pred_fallthru
          _
      $region24: #{tpu_custom_call.1} parent=5 // pred_fallthru
        _
      %p194 = scmp.le.s32.totalorder 1, %s16
      %p195 = scmp.lt.s32.totalorder %s16, 3
      %p196 = pnand %p194, %p195
      %p197 = pneg %p196
      // Predicated region
      $region29: #{tpu_custom_call.1} parent=5 // pred_check
        _
      $region30: #{tpu_custom_call.1} parent=5 // pred_check_branch
        %199 = sbr.rel (%p196) target = $region32
      $region31: #{tpu_custom_call.1} parent=5 // pred_region
        %s200 = ssub.s32 %s16, 1
        %s201 = sand.u32 %s41, 1
        %s202 = scalar_lea.sflag [#allocation3], %s201
        %s203 = sand.u32 %s41, 1
        %s204 = smul.addr %s203, 8
        %s205 = scalar_lea.vmem [#allocation2], %s204
        // Predicated region
        $region33: #{tpu_custom_call.1} parent=31 // pred_check
          %p206 = pneg %p54
        $region34: #{tpu_custom_call.1} parent=31 // pred_check_branch
          %208 = sbr.rel (%p206) target = $region36
        $region35: #{tpu_custom_call.1} parent=31 // pred_region
          %210 = dma.done %s202, 128
        $region36: #{tpu_custom_call.1} parent=31 // pred_fallthru
          _
        // Predicated region
        $region37: #{tpu_custom_call.1} parent=31 // pred_check
          %p211 = pneg %p80
        $region38: #{tpu_custom_call.1} parent=31 // pred_check_branch
          %213 = sbr.rel (%p211) target = $region40
        $region39: #{tpu_custom_call.1} parent=31 // pred_region
          %215 = dma.done [#allocation6], 512
        $region40: #{tpu_custom_call.1} parent=31 // pred_fallthru
          _
        %s216 = sand.u32 %s41, 1
        %s217 = scalar_lea.sflag [#allocation3], %s216
        %s218 = sand.u32 %s41, 1
        %s219 = smul.addr %s218, 8
        %s220 = scalar_lea.vmem [#allocation2], %s219
        %p221 = pneg %p54
        %p222 = pneg %p51
        %p223 = pneg %p80
        %p224 = pneg %p77
        %p225 = scmp.lt.s32.totalorder %s26, 0
        %s226 = scalar_select %p225, %s26, 0
        %s227 = scalar_lea.vmem %s2, %s226
        %p228 = pneg %p106
        %p229 = pneg %p103
        %p230 = pneg %p134
        %p231 = pneg %p131
        %s232 = sand.u32 %s121, 1
        %s233 = scalar_lea.sflag [#allocation4], %s232
        %s234 = sand.u32 %s121, 1
        %s235 = smul.addr %s234, 8
        %s236 = scalar_lea.vmem [#allocation7], %s235
        %p237 = scmp.lt.s32.totalorder %s26, 0
        %s238 = scalar_select %p237, %s26, 0
        %s239 = scalar_lea.vmem %s2, %s238
        %v240 = vld [vmem:[%s205] sm:$0xff]
        %v241 = vld [vmem:[#allocation5] sm:$0xff]
        %v242 = vld [vmem:[#allocation5 + $0x8] sm:$0xff]
        %v243 = vld [vmem:[#allocation5 + $0x10] sm:$0xff]
        %v244 = vld [vmem:[#allocation5 + $0x18] sm:$0xff]
        %v245 = vld [vmem:[%s239] sm:$0x1]
        %v247 = vperm.slane %v245, 0
        %vm249 = vcmask 261120
        %v251 = vsel %vm249, %v240, 0
        %253 = vmatpush.msra.mxu0 0.0
        %254 = vmatpush.msra.mxu0 0.0
        %255 = vmatpush.msra.mxu0 0.0
        %256 = vmatpush.msra.mxu0 0.0
        %257 = vmatpush.msra.mxu0 0.0
        %258 = vmatpush.msra.mxu0 0.0
        %259 = vmatpush.msra.mxu0 0.0
        %260 = vmatpush.msra.mxu0 0.0
        %261 = vmatpush.msra.mxu0 0.0
        %262 = vmatpush.msra.mxu0 0.0
        %263 = vmatpush.msra.mxu0 0.0
        %264 = vmatpush.msra.mxu0 0.0
        %265 = vmatpush.msra.mxu0 %v244
        %266 = vmatpush.msra.mxu0 %v243
        %267 = vmatpush.msra.mxu0 %v242
        %268 = vmatpush.msra.mxu0 %v241
        %269 = vmatmul.f32.gmra.mxu0 %v251
        %v270 = vpop.f32.mrf.mxu0
        %v271 = vadd.f32 %v247, %v270
        %272 = vdwg.mxu0
        %v273 = vand.u32 2147483647, %v271
        %vm274 = vcmp.le.f32.partialorder %v273, 0.7853982
        %vm275 = vcmp.lt.s32.totalorder %v271, 0
        %v276 = vand.u32 %v271, 2139095040
        %v277 = vshrl.u32 %v276, 23
        %v278 = vsub.s32 %v277, 127
        %v279 = vand.u32 2147483647, %v271
        %v280 = vand.u32 %v279, 8388607
        %v281 = vor.u32 %v280, 8388608
        %v282 = vsub.s32 0, %v281
        %v283 = vadd.s32 %v278, 1
        %vm284 = vcmp.gt.s32.totalorder %v283, 0
        %v285 = vsel %vm284, %v283, 0
        %v286 = vshrl.u32 %v285, 5
        %v287 = vand.u32 %v285, 31
        %v288 = vsub.s32 32, %v287
        %v289 = vshrl.u32 683565275, %v288
        %v290 = vshll.u32 683565275, %v287
        %v291 = vshrl.u32 2475754826, %v288
        %v292 = vor.u32 %v290, %v291
        %v293 = vshll.u32 2475754826, %v287
        %v294 = vshrl.u32 2131351028, %v288
        %v295 = vor.u32 %v293, %v294
        %v296 = vshll.u32 2131351028, %v287
        %v297 = vshrl.u32 2102212464, %v288
        %v298 = vor.u32 %v296, %v297
        %v299 = vshll.u32 2102212464, %v287
        %v300 = vshrl.u32 920167782, %v288
        %v301 = vor.u32 %v299, %v300
        %v302 = vshll.u32 920167782, %v287
        %v303 = vshrl.u32 1326507024, %v288
        %v304 = vor.u32 %v302, %v303
        %vm305 = vcmp.lt.s32.totalorder %v286, 1
        %vm306 = vcmp.lt.s32.totalorder %v286, 2
        %vm307 = vcmp.lt.s32.totalorder %v286, 3
        %vm308 = vcmp.lt.s32.totalorder %v286, 4
        %v309 = vsel %vm305, %v289, %v292
        %v310 = vsel %vm308, %v298, 2102212464
        %v311 = vsel %vm307, %v295, %v310
        %v312 = vsel %vm306, %v309, %v311
        %v313 = vsel %vm305, %v292, %v295
        %v314 = vsel %vm308, %v301, 920167782
        %v315 = vsel %vm307, %v298, %v314
        %v316 = vsel %vm306, %v313, %v315
        %v317 = vsel %vm305, %v295, %v298
        %v318 = vsel %vm308, %v304, 1326507024
        %v319 = vsel %vm307, %v301, %v318
        %v320 = vsel %vm306, %v317, %v319
        %v321 = vshll.u32 %v281, 8
        %v322 = vand.u32 %v321, 65535
        %v323 = vshrl.u32 %v321, 16
        %v324 = vand.u32 %v320, 65535
        %v325 = vshrl.u32 %v320, 16
        %v326 = vmul.u32 %v322, %v324
        %v327 = vmul.u32 %v322, %v325
        %v328 = vmul.u32 %v323, %v324
        %v329 = vmul.u32 %v323, %v325
        %v330 = vshll.u32 %v327, 16
        %v331 = vshrl.u32 %v327, 16
        %v332 = vshll.u32 %v328, 16
        %v333 = vshrl.u32 %v328, 16
        %vm334 = vc.u32 %v326, %v330
        %v335 = vsel %vm334, 1, 0
        %v336 = vadd.s32 %v326, %v330
        %v337 = vadd.s32 %v329, %v335
        %vm338 = vc.u32 %v336, %v332
        %v339 = vsel %vm338, 1, 0
        %v340 = vadd.s32 %v336, %v332
        %v341 = vadd.s32 %v337, %v339
        %v342 = vadd.s32 %v341, %v331
        %v343 = vadd.s32 %v342, %v333
        %v344 = vand.u32 %v321, 65535
        %v345 = vshrl.u32 %v321, 16
        %v346 = vand.u32 %v316, 65535
        %v347 = vshrl.u32 %v316, 16
        %v348 = vmul.u32 %v344, %v346
        %v349 = vmul.u32 %v344, %v347
        %v350 = vmul.u32 %v345, %v346
        %v351 = vmul.u32 %v345, %v347
        %v352 = vshll.u32 %v349, 16
        %v353 = vshrl.u32 %v349, 16
        %v354 = vshll.u32 %v350, 16
        %v355 = vshrl.u32 %v350, 16
        %vm356 = vc.u32 %v348, %v352
        %v357 = vsel %vm356, 1, 0
        %v358 = vadd.s32 %v348, %v352
        %v359 = vadd.s32 %v351, %v357
        %vm360 = vc.u32 %v358, %v354
        %v361 = vsel %vm360, 1, 0
        %v362 = vadd.s32 %v358, %v354
        %v363 = vadd.s32 %v359, %v361
        %v364 = vadd.s32 %v363, %v353
        %v365 = vadd.s32 %v364, %v355
        %v366 = vmul.u32 %v321, %v312
        %v367 = vadd.s32 %v343, %v362
        %vm368 = vc.u32 %v343, %v362
        %v369 = vadd.s32 %v365, 1
        %v370 = vsel %vm368, %v369, %v365
        %v371 = vadd.s32 %v366, %v370
        %v372 = vadd.s32 %v371, 536870912
        %v373 = vshrl.u32 %v372, 30
        %v374 = vshll.u32 %v373, 30
        %v375 = vsub.s32 %v371, %v374
        %vm376 = vcmp.lt.s32.totalorder %v375, 0
        %v377 = vsub.s32 0, %v375
        %v378 = vsel %vm376, %v377, %v375
        %v379 = vclz %v378
        %v380 = vsub.s32 %v379, 2
        %vm381 = vcmp.gt.s32.totalorder 0, %v380
        %v382 = vsel %vm381, 0, %v380
        %v383 = vsub.s32 32, %v382
        %v384 = vshll.u32 %v375, %v382
        %v385 = vshrl.u32 %v367, %v383
        %v386 = vor.u32 %v384, %v385
        %v387 = vsub.s32 4294967266, %v382
        %v388 = vadd.s32 %v387, 127
        %v389 = vshll.u32 %v388, 23
        %v390 = vor.u32 4788187, %v389
        %v391 = vand.u32 2147483647, %v390
        %v393 = vcvt.s32.f32 %v386
        %v394 = vmul.f32 %v393, %v391
        %v395 = vxor.u32 %v394, 2147483648
        %v396 = vsel %vm275, %v395, %v394
        %v397 = vsub.s32 4, %v373
        %v398 = vsel %vm275, %v397, %v373
        %v399 = vsel %vm274, %v271, %v396
        %v400 = vsel %vm274, 0, %v398
        %v401 = vmul.f32 %v399, %v399
        %v402 = vmul.f32 %v401, -0.001358992
        %v403 = vadd.f32 %v402, 0.041655596
        %v404 = vmul.f32 %v401, %v403
        %v405 = vadd.f32 %v404, -0.4999988
        %v406 = vmul.f32 %v401, %v405
        %v407 = vadd.f32 1.0, %v406
        %v408 = vmul.f32 %v399, %v399
        %v409 = vmul.f32 %v408, -0.00019511016
        %v410 = vadd.f32 %v409, 0.008332121
        %v411 = vmul.f32 %v408, %v410
        %v412 = vadd.f32 %v411, -0.16666654
        %v413 = vmul.f32 %v408, %v412
        %v414 = vadd.f32 %v413, 1.0
        %v415 = vmul.f32 %v414, %v399
        %vm416 = vweird.f32 %v271
        %v417 = vadd.s32 %v400, 3
        %v418 = vand.u32 %v417, 3
        %vm419 = vcmp.lt.s32.totalorder %v418, 2
        %vm420 = vcmp.eq.s32.totalorder %v418, 0
        %v421 = vxor.u32 %v415, 2147483648
        %v422 = vsel %vm420, %v407, %v421
        %vm423 = vcmp.eq.s32.totalorder %v418, 2
        %v424 = vxor.u32 %v407, 2147483648
        %v425 = vsel %vm423, %v424, %v415
        %v426 = vsel %vm419, %v422, %v425
        %v427 = vsel %vm416, nan, %v426
        %428 = vst [vmem:[%s236] sm:$0xff] %v427
        %s429 = sand.u32 %s121, 1
        %s430 = scalar_lea.sflag [#allocation4], %s429
        %s431 = sand.u32 %s121, 1
        %s432 = smul.addr %s431, 8
        %s433 = scalar_lea.vmem [#allocation7], %s432
        // Predicated region
        $region41: #{tpu_custom_call.1} parent=31 // pred_check
          %p434 = pneg %p131
        $region42: #{tpu_custom_call.1} parent=31 // pred_check_branch
          %436 = sbr.rel (%p434) target = $region44
        $region43: #{tpu_custom_call.1} parent=31 // pred_region
          %438 = vsyncadd %s430, 0
          %s439 = sadd.s32 %s26, %s25
          %s440 = smul.addr %s439, 8
          %s441 = scalar_lea.hbm %s3, %s440
          %s443 = sshll.u32 %s433, 4
          %s444 = int_to_ptr.vmem [resolvable:$true] %s443
          %s445 = sshll.u32 %s441, 4
          %s446 = int_to_ptr.hbm [resolvable:$true] %s445
          %448 = dma.vmem_to_hbm [thread:$0]  %s444, 128, %s446, %s430
        $region44: #{tpu_custom_call.1} parent=31 // pred_fallthru
          _
      $region32: #{tpu_custom_call.1} parent=5 // pred_fallthru
        _
      %p449 = scmp.le.s32.totalorder 2, %s16
      // Predicated region
      $region45: #{tpu_custom_call.1} parent=5 // pred_check
        %p450 = pneg %p449
      $region46: #{tpu_custom_call.1} parent=5 // pred_check_branch
        %452 = sbr.rel (%p450) target = $region48
      $region47: #{tpu_custom_call.1} parent=5 // pred_region
        %s453 = ssub.s32 %s16, 2
        // Predicated region
        $region49: #{tpu_custom_call.1} parent=47 // pred_check
          %p454 = pneg %p137
        $region50: #{tpu_custom_call.1} parent=47 // pred_check_branch
          %456 = sbr.rel (%p454) target = $region52
        $region51: #{tpu_custom_call.1} parent=47 // pred_region
          %s457 = sand.u32 %s122, 1
          %s458 = scalar_lea.sflag [#allocation4], %s457
          %s459 = sand.u32 %s122, 1
          %s460 = smul.addr %s459, 8
          %s461 = scalar_lea.vmem [#allocation7], %s460
          %463 = dma.done %s458, 128
        $region52: #{tpu_custom_call.1} parent=47 // pred_fallthru
          _
      $region48: #{tpu_custom_call.1} parent=5 // pred_fallthru
        _
    $region6: #{tpu_custom_call.1} parent=1 // loop_footer
      %s20 = sadd.s32 1, %s16
    $region7: #{tpu_custom_call.1} parent=1 // loop_footer_branch
      %15 = sbr.rel target = $region3
    $region8: #{tpu_custom_call.1} parent=1 // loop_exit
      _
    %464 = vsyncpa [#allocation3], 1
    %s465 = scalar_lea.sflag [#allocation3], 1
    %466 = vsyncpa %s465, 1
    %467 = vsyncpa [#allocation6], 1
    %468 = vsyncpa [#allocation4], 1
    %s469 = scalar_lea.sflag [#allocation4], 1
    %470 = vsyncpa %s469, 1

</llo_original>
